<compile_context>
chip_gen: v5e
topology: v5e:2x2
jax: 0.10.0
libtpu: 0.0.40
codegen_flags: <defaults>
</compile_context>

<pallas_src>
import functools
import math

import jax
import jax.numpy as jnp
from jax.experimental import pallas as pl
from jax.experimental.pallas import tpu as pltpu


def _round_up(x, m):
    return ((x + m - 1) // m) * m


def _cdiv(a, b):
    return (a + b - 1) // b


def _generator_fnn_kernel(x_ref, embp_ref,
                          w1x_ref, b1_ref,
                          w2_ref, b2_ref,
                          w3_ref, b3_ref,
                          w4_ref, b4_ref,
                          o_ref):
    """Fused 4-layer MLP, LeakyReLU(0.01) after the first three layers.

    bf16 matmuls with f32 MXU accumulation; bias-add + activation in f32.
    The embedding contribution to layer 1 arrives pre-projected (embp_ref).
    """
    neg = jnp.float32(0.01)

    # Layer 1: x @ W1[:L]  +  (Embedding @ W1[L:])[condition]  + b1.
    h = jnp.dot(x_ref[...], w1x_ref[...], preferred_element_type=jnp.float32)
    h = h + embp_ref[...] + b1_ref[...]
    h = jnp.where(h > 0, h, neg * h)

    # Layer 2.
    h = jnp.dot(h.astype(jnp.bfloat16), w2_ref[...],
                preferred_element_type=jnp.float32) + b2_ref[...]
    h = jnp.where(h > 0, h, neg * h)

    # Layer 3.
    h = jnp.dot(h.astype(jnp.bfloat16), w3_ref[...],
                preferred_element_type=jnp.float32) + b3_ref[...]
    h = jnp.where(h > 0, h, neg * h)

    # Layer 4 (no activation; the module's tanh is not applied in forward).
    o = jnp.dot(h.astype(jnp.bfloat16), w4_ref[...],
                preferred_element_type=jnp.float32) + b4_ref[...]
    o_ref[...] = o.astype(o_ref.dtype)


def init_params(key, latent_vector_size, features, sequence_len, conditions,
                embeddings):
    """Init mirroring PyTorch defaults: Embedding ~ N(0,1),
    Linear W,b ~ U(-1/sqrt(fan_in), 1/sqrt(fan_in)). Weights stored (in, out)."""
    L = latent_vector_size
    out_dim = features * sequence_len
    dims = [
        (L + embeddings, 2 * L),
        (2 * L, 4 * L),
        (4 * L, 4 * L),
        (4 * L, out_dim),
    ]
    keys = jax.random.split(key, 1 + 2 * len(dims))
    params = {"emb": jax.random.normal(keys[0], (conditions, embeddings),
                                       jnp.float32)}
    for li, (din, dout) in enumerate(dims):
        bound = 1.0 / math.sqrt(din)
        wk, bk = keys[1 + 2 * li], keys[2 + 2 * li]
        params[f"w{li + 1}"] = jax.random.uniform(
            wk, (din, dout), jnp.float32, -bound, bound)
        # Biases kept 2-D (1, dout) so they map cleanly to a VMEM block.
        params[f"b{li + 1}"] = jax.random.uniform(
            bk, (1, dout), jnp.float32, -bound, bound)
    return params


def prepare_params(params, latent_vector_size, *, lane=128):
    """One-time conversion to kernel-ready operands (do NOT call per forward).

    - splits W1, folds the embedding table into emb_proj = Embedding @ W1[L:]
    - casts weights to bf16 (biases stay f32)
    - pads W4/b4 columns to a multiple of 128 (lane-dense output stores)
    """
    L = latent_vector_size
    out_dim = params["w4"].shape[1]
    out_pad = _round_up(out_dim, lane)

    w4 = params["w4"].astype(jnp.bfloat16)
    b4 = params["b4"].astype(jnp.float32)
    if out_pad != out_dim:
        w4 = jnp.pad(w4, ((0, 0), (0, out_pad - out_dim)))
        b4 = jnp.pad(b4, ((0, 0), (0, out_pad - out_dim)))

    return {
        # (conditions, 2L) f32 — full-precision fold of the embedding matmul.
        "emb_proj": jnp.dot(params["emb"], params["w1"][L:],
                            preferred_element_type=jnp.float32),
        "w1x": params["w1"][:L].astype(jnp.bfloat16),
        "b1": params["b1"].astype(jnp.float32),
        "w2": params["w2"].astype(jnp.bfloat16),
        "b2": params["b2"].astype(jnp.float32),
        "w3": params["w3"].astype(jnp.bfloat16),
        "b3": params["b3"].astype(jnp.float32),
        "w4": w4,
        "b4": b4,
    }


def generator_fnn_forward(x, condition, prepared, *, out_dim, block_b=256):
    """x: (B, L) float, condition: (B,) int32, prepared: prepare_params output.

    Returns (B, out_dim) float32.
    """
    B, L = x.shape
    hidden1 = prepared["w1x"].shape[1]      # 2L
    out_pad = prepared["w4"].shape[1]       # round_up(out_dim, 128)

    # Embedding lookup + first-layer projection folded into one tiny gather.
    emb_proj = jnp.take(prepared["emb_proj"], condition, axis=0)   # (B, 2L) f32

    x_bf = x.astype(jnp.bfloat16)

    # Batch tiling: balance the tiles (minimal zero-padding), rows a multiple
    # of 16 so bf16 activation tiles are fully packed.
    nt = max(1, _cdiv(B, block_b))
    tb = _round_up(_cdiv(B, nt), 16)
    b_pad = nt * tb
    if b_pad != B:
        x_bf = jnp.pad(x_bf, ((0, b_pad - B), (0, 0)))
        emb_proj = jnp.pad(emb_proj, ((0, b_pad - B), (0, 0)))

    weight_ops = (prepared["w1x"], prepared["b1"],
                  prepared["w2"], prepared["b2"],
                  prepared["w3"], prepared["b3"],
                  prepared["w4"], prepared["b4"])
    operands = (x_bf, emb_proj) + weight_ops

    in_specs = [
        pl.BlockSpec((tb, L), lambda i: (i, 0)),          # x tile (bf16)
        pl.BlockSpec((tb, hidden1), lambda i: (i, 0)),    # emb_proj tile (f32)
    ] + [
        # Constant index_map -> loaded once, VMEM resident across grid steps;
        # single-buffered so resident weights don't pay 2x VMEM.
        pl.BlockSpec(op.shape, lambda i: (0, 0), pipeline_mode=pl.Buffered(1))
        for op in weight_ops
    ]
    out_specs = pl.BlockSpec((tb, out_pad), lambda i: (i, 0))

    flops = 2 * b_pad * sum(int(w.shape[0]) * int(w.shape[1])
                            for w in (prepared["w1x"], prepared["w2"],
                                      prepared["w3"], prepared["w4"]))
    bytes_accessed = int(sum(op.size * op.dtype.itemsize for op in operands)
                         + b_pad * out_pad * 4)
    cost = pl.CostEstimate(flops=flops, transcendentals=0,
                           bytes_accessed=bytes_accessed)

    out = pl.pallas_call(
        _generator_fnn_kernel,
        out_shape=jax.ShapeDtypeStruct((b_pad, out_pad), jnp.float32),
        grid_spec=pltpu.PrefetchScalarGridSpec(
            num_scalar_prefetch=0,
            grid=(nt,),
            in_specs=in_specs,
            out_specs=out_specs,
        ),
        compiler_params=pltpu.CompilerParams(
            dimension_semantics=("parallel",),
            # Headroom under v7x's 64 MiB/TC physical VMEM; fine on v5e/v6e.
            vmem_limit_bytes=48 * 1024 * 1024,
        ),
        cost_estimate=cost,
    )(*operands)
    return out[:B, :out_dim]


def _reference_forward(x, condition, prepared, out_dim):
    """Pure-JAX reference using the identical bf16-weight / f32-accum recipe."""
    emb_proj = jnp.take(prepared["emb_proj"], condition, axis=0)
    h = (jnp.dot(x.astype(jnp.bfloat16), prepared["w1x"],
                 preferred_element_type=jnp.float32)
         + emb_proj + prepared["b1"])
    h = jnp.where(h > 0, h, 0.01 * h)
    for li in (2, 3):
        h = jnp.dot(h.astype(jnp.bfloat16), prepared[f"w{li}"],
                    preferred_element_type=jnp.float32) + prepared[f"b{li}"]
        h = jnp.where(h > 0, h, 0.01 * h)
    o = jnp.dot(h.astype(jnp.bfloat16), prepared["w4"],
                preferred_element_type=jnp.float32) + prepared["b4"]
    return o[:, :out_dim]


if __name__ == "__main__":
    # Small shapes consistent with the module.
    latent_vector_size = 32
    features = 4
    sequence_len = 8
    conditions = 5
    embeddings = 8
    batch = 2
    out_dim = features * sequence_len

    key = jax.random.PRNGKey(0)
    k_param, k_x, k_c = jax.random.split(key, 3)

    params = init_params(k_param, latent_vector_size, features, sequence_len,
                         conditions, embeddings)
    prepared = prepare_params(params, latent_vector_size)   # one-time bf16 prep

    x = jax.random.normal(k_x, (batch, latent_vector_size), jnp.float32)
    condition = jax.random.randint(k_c, (batch,), 0, conditions, jnp.int32)

    fwd = jax.jit(functools.partial(generator_fnn_forward, out_dim=out_dim))
    out = jax.block_until_ready(fwd(x, condition, prepared))

    ref = _reference_forward(x, condition, prepared, out_dim)
    assert out.shape == (batch, out_dim), out.shape
    assert jnp.allclose(out, ref, atol=1e-2, rtol=1e-2), (
        float(jnp.max(jnp.abs(out - ref))))

    print("KERNEL_OK")
</pallas_src>

<mosaic_0001>
module attributes {stable_mosaic.version = 11 : i64} {
  func.func @_generator_fnn_kernel(%arg0: i32, %arg1: memref<16x32xbf16, #tpu.memory_space<vmem>>, %arg2: memref<16x64xf32, #tpu.memory_space<vmem>>, %arg3: memref<32x64xbf16, #tpu.memory_space<vmem>>, %arg4: memref<1x64xf32, #tpu.memory_space<vmem>>, %arg5: memref<64x128xbf16, #tpu.memory_space<vmem>>, %arg6: memref<1x128xf32, #tpu.memory_space<vmem>>, %arg7: memref<128x128xbf16, #tpu.memory_space<vmem>>, %arg8: memref<1x128xf32, #tpu.memory_space<vmem>>, %arg9: memref<128x128xbf16, #tpu.memory_space<vmem>>, %arg10: memref<1x128xf32, #tpu.memory_space<vmem>>, %arg11: memref<16x128xf32, #tpu.memory_space<vmem>>) attributes {dimension_semantics = [#tpu.dimension_semantics<parallel>], iteration_bounds = array<i64: 1>, scalar_prefetch = 0 : i64, scratch_operands = 0 : i64, tpu.core_type = #tpu.core_type<tc>, window_params = [{transform_indices = @transform_0, window_bounds = array<i64: 16, 32>}, {transform_indices = @transform_1, window_bounds = array<i64: 16, 64>}, {pipeline_mode = #tpu.pipeline_mode<synchronous>, transform_indices = @transform_2, window_bounds = array<i64: 32, 64>}, {pipeline_mode = #tpu.pipeline_mode<synchronous>, transform_indices = @transform_3, window_bounds = array<i64: 1, 64>}, {pipeline_mode = #tpu.pipeline_mode<synchronous>, transform_indices = @transform_4, window_bounds = array<i64: 64, 128>}, {pipeline_mode = #tpu.pipeline_mode<synchronous>, transform_indices = @transform_5, window_bounds = array<i64: 1, 128>}, {pipeline_mode = #tpu.pipeline_mode<synchronous>, transform_indices = @transform_6, window_bounds = array<i64: 128, 128>}, {pipeline_mode = #tpu.pipeline_mode<synchronous>, transform_indices = @transform_7, window_bounds = array<i64: 1, 128>}, {pipeline_mode = #tpu.pipeline_mode<synchronous>, transform_indices = @transform_8, window_bounds = array<i64: 128, 128>}, {pipeline_mode = #tpu.pipeline_mode<synchronous>, transform_indices = @transform_9, window_bounds = array<i64: 1, 128>}, {transform_indices = @transform_10, window_bounds = array<i64: 16, 128>}]} {
    %c0 = arith.constant 0 : index
    %c0_0 = arith.constant 0 : index
    %0 = vector.load %arg1[%c0, %c0_0] : memref<16x32xbf16, #tpu.memory_space<vmem>>, vector<16x32xbf16>
    %c0_1 = arith.constant 0 : index
    %c0_2 = arith.constant 0 : index
    %1 = vector.load %arg3[%c0_1, %c0_2] : memref<32x64xbf16, #tpu.memory_space<vmem>>, vector<32x64xbf16>
    %cst = arith.constant dense<0.000000e+00> : vector<16x64xf32>
    %2 = tpu.matmul %0, %1, %cst {dimension_numbers = #tpu.dot_dimension_numbers<[1], [0], [0], [1], [0, 0, 1, 1], [], []>} : vector<16x32xbf16>, vector<32x64xbf16>, vector<16x64xf32> -> vector<16x64xf32>
    %c0_3 = arith.constant 0 : index
    %c0_4 = arith.constant 0 : index
    %3 = vector.load %arg2[%c0_3, %c0_4] : memref<16x64xf32, #tpu.memory_space<vmem>>, vector<16x64xf32>
    %4 = arith.addf %2, %3 : vector<16x64xf32>
    %c0_5 = arith.constant 0 : index
    %c0_6 = arith.constant 0 : index
    %5 = vector.load %arg4[%c0_5, %c0_6] : memref<1x64xf32, #tpu.memory_space<vmem>>, vector<1x64xf32>
    %6 = vector.broadcast %5 : vector<1x64xf32> to vector<16x64xf32>
    %7 = arith.addf %4, %6 : vector<16x64xf32>
    %cst_7 = arith.constant 0.000000e+00 : f32
    %8 = vector.broadcast %cst_7 : f32 to vector<16x64xf32>
    %9 = arith.cmpf ogt, %7, %8 : vector<16x64xf32>
    %cst_8 = arith.constant 0.00999999977 : f32
    %10 = vector.broadcast %cst_8 : f32 to vector<16x64xf32>
    %11 = arith.mulf %10, %7 : vector<16x64xf32>
    %12 = arith.select %9, %7, %11 : vector<16x64xi1>, vector<16x64xf32>
    %13 = arith.truncf %12 : vector<16x64xf32> to vector<16x64xbf16>
    %c0_9 = arith.constant 0 : index
    %c0_10 = arith.constant 0 : index
    %14 = vector.load %arg5[%c0_9, %c0_10] : memref<64x128xbf16, #tpu.memory_space<vmem>>, vector<64x128xbf16>
    %cst_11 = arith.constant dense<0.000000e+00> : vector<16x128xf32>
    %15 = tpu.matmul %13, %14, %cst_11 {dimension_numbers = #tpu.dot_dimension_numbers<[1], [0], [0], [1], [0, 0, 1, 1], [], []>} : vector<16x64xbf16>, vector<64x128xbf16>, vector<16x128xf32> -> vector<16x128xf32>
    %c0_12 = arith.constant 0 : index
    %c0_13 = arith.constant 0 : index
    %16 = vector.load %arg6[%c0_12, %c0_13] : memref<1x128xf32, #tpu.memory_space<vmem>>, vector<1x128xf32>
    %17 = vector.broadcast %16 : vector<1x128xf32> to vector<16x128xf32>
    %18 = arith.addf %15, %17 : vector<16x128xf32>
    %cst_14 = arith.constant 0.000000e+00 : f32
    %19 = vector.broadcast %cst_14 : f32 to vector<16x128xf32>
    %20 = arith.cmpf ogt, %18, %19 : vector<16x128xf32>
    %cst_15 = arith.constant 0.00999999977 : f32
    %21 = vector.broadcast %cst_15 : f32 to vector<16x128xf32>
    %22 = arith.mulf %21, %18 : vector<16x128xf32>
    %23 = arith.select %20, %18, %22 : vector<16x128xi1>, vector<16x128xf32>
    %24 = arith.truncf %23 : vector<16x128xf32> to vector<16x128xbf16>
    %c0_16 = arith.constant 0 : index
    %c0_17 = arith.constant 0 : index
    %25 = vector.load %arg7[%c0_16, %c0_17] : memref<128x128xbf16, #tpu.memory_space<vmem>>, vector<128x128xbf16>
    %cst_18 = arith.constant dense<0.000000e+00> : vector<16x128xf32>
    %26 = tpu.matmul %24, %25, %cst_18 {dimension_numbers = #tpu.dot_dimension_numbers<[1], [0], [0], [1], [0, 0, 1, 1], [], []>} : vector<16x128xbf16>, vector<128x128xbf16>, vector<16x128xf32> -> vector<16x128xf32>
    %c0_19 = arith.constant 0 : index
    %c0_20 = arith.constant 0 : index
    %27 = vector.load %arg8[%c0_19, %c0_20] : memref<1x128xf32, #tpu.memory_space<vmem>>, vector<1x128xf32>
    %28 = vector.broadcast %27 : vector<1x128xf32> to vector<16x128xf32>
    %29 = arith.addf %26, %28 : vector<16x128xf32>
    %cst_21 = arith.constant 0.000000e+00 : f32
    %30 = vector.broadcast %cst_21 : f32 to vector<16x128xf32>
    %31 = arith.cmpf ogt, %29, %30 : vector<16x128xf32>
    %cst_22 = arith.constant 0.00999999977 : f32
    %32 = vector.broadcast %cst_22 : f32 to vector<16x128xf32>
    %33 = arith.mulf %32, %29 : vector<16x128xf32>
    %34 = arith.select %31, %29, %33 : vector<16x128xi1>, vector<16x128xf32>
    %35 = arith.truncf %34 : vector<16x128xf32> to vector<16x128xbf16>
    %c0_23 = arith.constant 0 : index
    %c0_24 = arith.constant 0 : index
    %36 = vector.load %arg9[%c0_23, %c0_24] : memref<128x128xbf16, #tpu.memory_space<vmem>>, vector<128x128xbf16>
    %cst_25 = arith.constant dense<0.000000e+00> : vector<16x128xf32>
    %37 = tpu.matmul %35, %36, %cst_25 {dimension_numbers = #tpu.dot_dimension_numbers<[1], [0], [0], [1], [0, 0, 1, 1], [], []>} : vector<16x128xbf16>, vector<128x128xbf16>, vector<16x128xf32> -> vector<16x128xf32>
    %c0_26 = arith.constant 0 : index
    %c0_27 = arith.constant 0 : index
    %38 = vector.load %arg10[%c0_26, %c0_27] : memref<1x128xf32, #tpu.memory_space<vmem>>, vector<1x128xf32>
    %39 = vector.broadcast %38 : vector<1x128xf32> to vector<16x128xf32>
    %40 = arith.addf %37, %39 : vector<16x128xf32>
    %c0_28 = arith.constant 0 : index
    %c0_29 = arith.constant 0 : index
    %41 = vector.load %arg11[%c0_28, %c0_29] : memref<16x128xf32, #tpu.memory_space<vmem>>, vector<16x128xf32>
    tpu.vector_store %arg11[%c0_28, %c0_29], %40 {strides = array<i32>} : memref<16x128xf32, #tpu.memory_space<vmem>>, vector<16x128xf32>,
    return
  }
  func.func @transform_0(%arg0: i32) -> (i32, i32) {
    %c0_i32 = arith.constant 0 : i32
    %c0_i32_0 = arith.constant 0 : i32
    return %arg0, %c0_i32 : i32, i32
  }
  func.func @transform_1(%arg0: i32) -> (i32, i32) {
    %c0_i32 = arith.constant 0 : i32
    %c0_i32_0 = arith.constant 0 : i32
    return %arg0, %c0_i32 : i32, i32
  }
  func.func @transform_2(%arg0: i32) -> (i32, i32) {
    %c0_i32 = arith.constant 0 : i32
    %c0_i32_0 = arith.constant 0 : i32
    %c0_i32_1 = arith.constant 0 : i32
    return %c0_i32, %c0_i32_0 : i32, i32
  }
  func.func @transform_3(%arg0: i32) -> (i32, i32) {
    %c0_i32 = arith.constant 0 : i32
    %c0_i32_0 = arith.constant 0 : i32
    %c0_i32_1 = arith.constant 0 : i32
    return %c0_i32, %c0_i32_0 : i32, i32
  }
  func.func @transform_4(%arg0: i32) -> (i32, i32) {
    %c0_i32 = arith.constant 0 : i32
    %c0_i32_0 = arith.constant 0 : i32
    %c0_i32_1 = arith.constant 0 : i32
    return %c0_i32, %c0_i32_0 : i32, i32
  }
  func.func @transform_5(%arg0: i32) -> (i32, i32) {
    %c0_i32 = arith.constant 0 : i32
    %c0_i32_0 = arith.constant 0 : i32
    %c0_i32_1 = arith.constant 0 : i32
    return %c0_i32, %c0_i32_0 : i32, i32
  }
  func.func @transform_6(%arg0: i32) -> (i32, i32) {
    %c0_i32 = arith.constant 0 : i32
    %c0_i32_0 = arith.constant 0 : i32
    %c0_i32_1 = arith.constant 0 : i32
    return %c0_i32, %c0_i32_0 : i32, i32
  }
  func.func @transform_7(%arg0: i32) -> (i32, i32) {
    %c0_i32 = arith.constant 0 : i32
    %c0_i32_0 = arith.constant 0 : i32
    %c0_i32_1 = arith.constant 0 : i32
    return %c0_i32, %c0_i32_0 : i32, i32
  }
  func.func @transform_8(%arg0: i32) -> (i32, i32) {
    %c0_i32 = arith.constant 0 : i32
    %c0_i32_0 = arith.constant 0 : i32
    %c0_i32_1 = arith.constant 0 : i32
    return %c0_i32, %c0_i32_0 : i32, i32
  }
  func.func @transform_9(%arg0: i32) -> (i32, i32) {
    %c0_i32 = arith.constant 0 : i32
    %c0_i32_0 = arith.constant 0 : i32
    %c0_i32_1 = arith.constant 0 : i32
    return %c0_i32, %c0_i32_0 : i32, i32
  }
  func.func @transform_10(%arg0: i32) -> (i32, i32) {
    %c0_i32 = arith.constant 0 : i32
    %c0_i32_0 = arith.constant 0 : i32
    return %arg0, %c0_i32 : i32, i32
  }
}

</mosaic_0001>

<llo_original>
// kernel: generator_fnn_forward.1
$region0: #{generator_fnn_forward.1}
  #allocation0 [shape = 'u32[]', space=smem, size = 0x4, offset = 0x4, fixed_abs, tag = 'smem constant byte address 0x4 - core index']
  #allocation1 [shape = 'u32[72,128]{1,0:T(1,128)}', space=vmem, size = 0x9000, scoped, tag = 'internal scratch']
  %s0 = inlined_call_operand.vmem [shape: bf16[16,32], index: 0, kind: input, shape index: {}]
  %s1 = inlined_call_operand.vmem [shape: f32[16,64], index: 1, kind: input, shape index: {}]
  %s2 = inlined_call_operand.hbm [shape: bf16[32,64], index: 2, kind: input, shape index: {}]
  %s3 = inlined_call_operand.vmem [shape: f32[1,64], index: 3, kind: input, shape index: {}]
  %s4 = inlined_call_operand.hbm [shape: bf16[64,128], index: 4, kind: input, shape index: {}]
  %s5 = inlined_call_operand.vmem [shape: f32[1,128], index: 5, kind: input, shape index: {}]
  %s6 = inlined_call_operand.vmem [shape: bf16[128,128], index: 6, kind: input, shape index: {}]
  %s7 = inlined_call_operand.vmem [shape: f32[1,128], index: 7, kind: input, shape index: {}]
  %s8 = inlined_call_operand.hbm [shape: bf16[128,128], index: 8, kind: input, shape index: {}]
  %s9 = inlined_call_operand.vmem [shape: f32[1,128], index: 9, kind: input, shape index: {}]
  %s10 = inlined_call_operand.vmem [shape: f32[16,128], index: 10, kind: output, shape index: {}]
  %s11 = sld [smem:[#allocation0]]
  $region62: #{generator_fnn_forward.1} parent=0
    _
  %s13 = ssub.s32 1, %s11
  %s14 = scalar_select 0, %s13, %s11
  $region1: #{generator_fnn_forward.1} parent=0
    #allocation2 [shape = 'u8[8192]{0}', space=vmem, size = 0x2000, scoped, tag = 'input window, operand 2, single buffered']
    #allocation3 [shape = 's32[1]{0}', space=sflag, size = 0x4, scoped, tag = 'scoped memory for generator_fnn_forward.1']
    #allocation4 [shape = 'u8[16384]{0}', space=vmem, size = 0x4000, scoped, tag = 'input window, operand 4, single buffered']
    #allocation5 [shape = 's32[1]{0}', space=sflag, size = 0x4, scoped, tag = 'scoped memory for generator_fnn_forward.1']
    #allocation6 [shape = 'u8[32768]{0}', space=vmem, size = 0x8000, scoped, tag = 'input window, operand 8, single buffered']
    %15 = vsyncpa [#allocation3], 0
    %16 = vsyncpa [#allocation5], 0
    // Predicated region
    $region2: #{generator_fnn_forward.1} parent=1 // pred_check
      _
    $region3: #{generator_fnn_forward.1} parent=1 // pred_check_branch
      %18 = sbr.rel (0) target = $region5
    $region4: #{generator_fnn_forward.1} parent=1 // pred_region
      _
    $region5: #{generator_fnn_forward.1} parent=1 // pred_fallthru
      _
    // Predicated region
    $region6: #{generator_fnn_forward.1} parent=1 // pred_check
      _
    $region7: #{generator_fnn_forward.1} parent=1 // pred_check_branch
      %20 = sbr.rel (0) target = $region9
    $region8: #{generator_fnn_forward.1} parent=1 // pred_region
      _
    $region9: #{generator_fnn_forward.1} parent=1 // pred_fallthru
      _
    // Predicated region
    $region10: #{generator_fnn_forward.1} parent=1 // pred_check
      _
    $region11: #{generator_fnn_forward.1} parent=1 // pred_check_branch
      %22 = sbr.rel (0) target = $region13
    $region12: #{generator_fnn_forward.1} parent=1 // pred_region
      %24 = vsyncadd [#allocation3], 0
      %s25 = sshll.u32 %s2, 4
      %s26 = int_to_ptr.hbm [resolvable:$true] %s25
      %s27 = sshll.u32 [#allocation2], 4
      %s28 = int_to_ptr.vmem [resolvable:$true] %s27
      %33 = dma.hbm_to_vmem [thread:$0]  %s26, 256, %s28, [#allocation3], 64, 64, 4
    $region13: #{generator_fnn_forward.1} parent=1 // pred_fallthru
      _
    // Predicated region
    $region14: #{generator_fnn_forward.1} parent=1 // pred_check
      _
    $region15: #{generator_fnn_forward.1} parent=1 // pred_check_branch
      %35 = sbr.rel (0) target = $region17
    $region16: #{generator_fnn_forward.1} parent=1 // pred_region
      _
    $region17: #{generator_fnn_forward.1} parent=1 // pred_fallthru
      _
    // Predicated region
    $region18: #{generator_fnn_forward.1} parent=1 // pred_check
      _
    $region19: #{generator_fnn_forward.1} parent=1 // pred_check_branch
      %37 = sbr.rel (0) target = $region21
    $region20: #{generator_fnn_forward.1} parent=1 // pred_region
      %39 = vsyncadd [#allocation5], 0
      %s40 = sshll.u32 %s4, 4
      %s41 = int_to_ptr.hbm [resolvable:$true] %s40
      %s42 = sshll.u32 [#allocation4], 4
      %s43 = int_to_ptr.vmem [resolvable:$true] %s42
      %48 = dma.hbm_to_vmem [thread:$0]  %s41, 512, %s43, [#allocation5], 64, 64, 4
    $region21: #{generator_fnn_forward.1} parent=1 // pred_fallthru
      _
    // Predicated region
    $region22: #{generator_fnn_forward.1} parent=1 // pred_check
      _
    $region23: #{generator_fnn_forward.1} parent=1 // pred_check_branch
      %50 = sbr.rel (0) target = $region25
    $region24: #{generator_fnn_forward.1} parent=1 // pred_region
      _
    $region25: #{generator_fnn_forward.1} parent=1 // pred_fallthru
      _
    // Predicated region
    $region26: #{generator_fnn_forward.1} parent=1 // pred_check
      _
    $region27: #{generator_fnn_forward.1} parent=1 // pred_check_branch
      %52 = sbr.rel (0) target = $region29
    $region28: #{generator_fnn_forward.1} parent=1 // pred_region
      _
    $region29: #{generator_fnn_forward.1} parent=1 // pred_fallthru
      _
    // Predicated region
    $region30: #{generator_fnn_forward.1} parent=1 // pred_check
      _
    $region31: #{generator_fnn_forward.1} parent=1 // pred_check_branch
      %54 = sbr.rel (0) target = $region33
    $region32: #{generator_fnn_forward.1} parent=1 // pred_region
      _
    $region33: #{generator_fnn_forward.1} parent=1 // pred_fallthru
      _
    // Predicated region
    $region34: #{generator_fnn_forward.1} parent=1 // pred_check
      _
    $region35: #{generator_fnn_forward.1} parent=1 // pred_check_branch
      %56 = sbr.rel (0) target = $region37
    $region36: #{generator_fnn_forward.1} parent=1 // pred_region
      %58 = vsyncadd [#allocation5], 0
      %s59 = sshll.u32 %s8, 4
      %s60 = int_to_ptr.hbm [resolvable:$true] %s59
      %s61 = sshll.u32 [#allocation6], 4
      %s62 = int_to_ptr.vmem [resolvable:$true] %s61
      %67 = dma.hbm_to_vmem [thread:$0]  %s60, 1024, %s62, [#allocation5], 64, 64, 4
    $region37: #{generator_fnn_forward.1} parent=1 // pred_fallthru
      _
    // Predicated region
    $region38: #{generator_fnn_forward.1} parent=1 // pred_check
      _
    $region39: #{generator_fnn_forward.1} parent=1 // pred_check_branch
      %69 = sbr.rel (0) target = $region41
    $region40: #{generator_fnn_forward.1} parent=1 // pred_region
      _
    $region41: #{generator_fnn_forward.1} parent=1 // pred_fallthru
      _
    // Predicated region
    $region42: #{generator_fnn_forward.1} parent=1 // pred_check
      _
    $region43: #{generator_fnn_forward.1} parent=1 // pred_check_branch
      %71 = sbr.rel (0) target = $region45
    $region44: #{generator_fnn_forward.1} parent=1 // pred_region
      %73 = dma.done [#allocation3], 256
    $region45: #{generator_fnn_forward.1} parent=1 // pred_fallthru
      _
    // Predicated region
    $region46: #{generator_fnn_forward.1} parent=1 // pred_check
      _
    $region47: #{generator_fnn_forward.1} parent=1 // pred_check_branch
      %75 = sbr.rel (0) target = $region49
    $region48: #{generator_fnn_forward.1} parent=1 // pred_region
      %77 = dma.done [#allocation5], 512
    $region49: #{generator_fnn_forward.1} parent=1 // pred_fallthru
      _
    // Predicated region
    $region50: #{generator_fnn_forward.1} parent=1 // pred_check
      _
    $region51: #{generator_fnn_forward.1} parent=1 // pred_check_branch
      %79 = sbr.rel (0) target = $region53
    $region52: #{generator_fnn_forward.1} parent=1 // pred_region
      %81 = dma.done [#allocation5], 1024
    $region53: #{generator_fnn_forward.1} parent=1 // pred_fallthru
      _
    %v83 = vld [vmem:[%s0] sm:$0xf]
    %v84 = vld [vmem:[%s0 + $0x4] sm:$0xf]
    %v85 = vld [vmem:[#allocation2] sm:$0xf]
    %v86 = vld [vmem:[#allocation2 + $0x4] sm:$0xf]
    %v87 = vld [vmem:[#allocation2 + $0x8] sm:$0xf]
    %v88 = vld [vmem:[#allocation2 + $0xc] sm:$0xf]
    %v89 = vld [vmem:[%s1] sm:$0xff]
    %v90 = vld [vmem:[%s1 + $0x8] sm:$0xff]
    %v93 = vunpack.c.l.b16 %v83
    %v94 = vunpack.c.l.b16 %v84
    %v95 = vpack.c.b16 %v94, %v93
    %v100 = vunpack.c.l.b16 %v85
    %v101 = vunpack.c.l.b16 %v86
    %v102 = vunpack.c.l.b16 %v87
    %v103 = vunpack.c.l.b16 %v88
    %v104 = vpack.c.b16 %v101, %v100
    %v105 = vpack.c.b16 %v103, %v102
    %vm108 = vcmask 261120
    %v110 = vsel %vm108, %v95, 0
    %112 = vmatpush.bf16.msra.mxu0 0
    %113 = vmatpush.bf16.msra.mxu0 0
    %114 = vmatpush.bf16.msra.mxu0 0
    %115 = vmatpush.bf16.msra.mxu0 0
    %116 = vmatpush.bf16.msra.mxu0 0
    %117 = vmatpush.bf16.msra.mxu0 0
    %118 = vmatpush.bf16.msra.mxu0 %v105
    %119 = vmatpush.bf16.msra.mxu0 %v104
    %120 = vmatmul.bf16.gmra.mxu0 %v110
    %v121 = vpop.f32.mrf.mxu0
    %v122 = vadd.f32 %v89, %v121
    %v123 = vpop.f32.mrf.mxu0
    %v124 = vadd.f32 %v90, %v123
    %125 = vdwg.mxu0
    %v126 = vld [vmem:[%s3] sm:$0x1]
    %v128 = vperm.slane %v126, 0
    %v130 = vadd.f32 %v122, %v128
    %v131 = vadd.f32 %v124, %v128
    %vm132 = vcmp.gt.f32.partialorder %v130, 0.0
    %vm133 = vcmp.gt.f32.partialorder %v131, 0.0
    %v134 = vmul.f32 %v130, 0.01
    %v135 = vmul.f32 %v131, 0.01
    %v136 = vsel %vm132, %v130, %v134
    %v137 = vsel %vm133, %v131, %v135
    %v138 = vpack.c.bf16 %v137, %v136
    %v139 = vld [vmem:[#allocation4] sm:$0xf]
    %v140 = vld [vmem:[#allocation4 + $0x4] sm:$0xf]
    %v141 = vld [vmem:[#allocation4 + $0x8] sm:$0xf]
    %v142 = vld [vmem:[#allocation4 + $0xc] sm:$0xf]
    %v143 = vld [vmem:[#allocation4 + $0x10] sm:$0xf]
    %v144 = vld [vmem:[#allocation4 + $0x14] sm:$0xf]
    %v145 = vld [vmem:[#allocation4 + $0x18] sm:$0xf]
    %v146 = vld [vmem:[#allocation4 + $0x1c] sm:$0xf]
    %v147 = vld [vmem:[%s5] sm:$0x1]
    %v149 = vperm.slane %v147, 0
    %v159 = vunpack.c.l.b16 %v139
    %v160 = vunpack.c.l.b16 %v140
    %v161 = vunpack.c.l.b16 %v141
    %v162 = vunpack.c.l.b16 %v142
    %v163 = vunpack.c.l.b16 %v143
    %v164 = vunpack.c.l.b16 %v144
    %v165 = vunpack.c.l.b16 %v145
    %v166 = vunpack.c.l.b16 %v146
    %v167 = vpack.c.b16 %v160, %v159
    %v168 = vpack.c.b16 %v162, %v161
    %v169 = vpack.c.b16 %v164, %v163
    %v170 = vpack.c.b16 %v166, %v165
    %vm175 = vcmask 523264
    %v177 = vsel %vm175, %v138, 0
    %179 = vmatpush.bf16.msra.mxu0 0
    %180 = vmatpush.bf16.msra.mxu0 0
    %181 = vmatpush.bf16.msra.mxu0 0
    %182 = vmatpush.bf16.msra.mxu0 0
    %183 = vmatpush.bf16.msra.mxu0 %v170
    %184 = vmatpush.bf16.msra.mxu0 %v169
    %185 = vmatpush.bf16.msra.mxu0 %v168
    %186 = vmatpush.bf16.msra.mxu0 %v167
    %187 = vmatmul.bf16.gmra.mxu0 %v177
    %v188 = vpop.f32.mrf.mxu0
    %v189 = vadd.f32 %v149, %v188
    %v190 = vpop.f32.mrf.mxu0
    %v191 = vadd.f32 %v149, %v190
    %192 = vdwg.mxu0
    %vm193 = vcmp.gt.f32.partialorder %v189, 0.0
    %vm194 = vcmp.gt.f32.partialorder %v191, 0.0
    %v195 = vmul.f32 %v189, 0.01
    %v196 = vmul.f32 %v191, 0.01
    %v197 = vsel %vm193, %v189, %v195
    %v198 = vsel %vm194, %v191, %v196
    %v199 = vpack.c.bf16 %v198, %v197
    %v200 = vld [vmem:[%s6] sm:$0xf]
    %v201 = vld [vmem:[%s6 + $0x4] sm:$0xf]
    %v202 = vld [vmem:[%s6 + $0x8] sm:$0xf]
    %v203 = vld [vmem:[%s6 + $0xc] sm:$0xf]
    %v204 = vld [vmem:[%s6 + $0x10] sm:$0xf]
    %v205 = vld [vmem:[%s6 + $0x14] sm:$0xf]
    %v206 = vld [vmem:[%s6 + $0x18] sm:$0xf]
    %v207 = vld [vmem:[%s6 + $0x1c] sm:$0xf]
    %v208 = vld [vmem:[%s6 + $0x20] sm:$0xf]
    %v209 = vld [vmem:[%s6 + $0x24] sm:$0xf]
    %v210 = vld [vmem:[%s6 + $0x28] sm:$0xf]
    %v211 = vld [vmem:[%s6 + $0x2c] sm:$0xf]
    %v212 = vld [vmem:[%s6 + $0x30] sm:$0xf]
    %v213 = vld [vmem:[%s6 + $0x34] sm:$0xf]
    %v214 = vld [vmem:[%s6 + $0x38] sm:$0xf]
    %v215 = vld [vmem:[%s6 + $0x3c] sm:$0xf]
    %v216 = vld [vmem:[%s7] sm:$0x1]
    %v218 = vperm.slane %v216, 0
    %v236 = vunpack.c.l.b16 %v200
    %v237 = vunpack.c.l.b16 %v201
    %v238 = vunpack.c.l.b16 %v202
    %v239 = vunpack.c.l.b16 %v203
    %v240 = vunpack.c.l.b16 %v204
    %v241 = vunpack.c.l.b16 %v205
    %v242 = vunpack.c.l.b16 %v206
    %v243 = vunpack.c.l.b16 %v207
    %v244 = vunpack.c.l.b16 %v208
    %v245 = vunpack.c.l.b16 %v209
    %v246 = vunpack.c.l.b16 %v210
    %v247 = vunpack.c.l.b16 %v211
    %v248 = vunpack.c.l.b16 %v212
    %v249 = vunpack.c.l.b16 %v213
    %v250 = vunpack.c.l.b16 %v214
    %v251 = vunpack.c.l.b16 %v215
    %v252 = vpack.c.b16 %v237, %v236
    %v253 = vpack.c.b16 %v239, %v238
    %v254 = vpack.c.b16 %v241, %v240
    %v255 = vpack.c.b16 %v243, %v242
    %v256 = vpack.c.b16 %v245, %v244
    %v257 = vpack.c.b16 %v247, %v246
    %v258 = vpack.c.b16 %v249, %v248
    %v259 = vpack.c.b16 %v251, %v250
    %268 = vmatpush.bf16.msra.mxu0 %v259
    %269 = vmatpush.bf16.msra.mxu0 %v258
    %270 = vmatpush.bf16.msra.mxu0 %v257
    %271 = vmatpush.bf16.msra.mxu0 %v256
    %272 = vmatpush.bf16.msra.mxu0 %v255
    %273 = vmatpush.bf16.msra.mxu0 %v254
    %274 = vmatpush.bf16.msra.mxu0 %v253
    %275 = vmatpush.bf16.msra.mxu0 %v252
    %276 = vmatmul.bf16.gmra.mxu0 %v199
    %v277 = vpop.f32.mrf.mxu0
    %v278 = vadd.f32 %v218, %v277
    %v279 = vpop.f32.mrf.mxu0
    %v280 = vadd.f32 %v218, %v279
    %281 = vdwg.mxu0
    %vm282 = vcmp.gt.f32.partialorder %v278, 0.0
    %vm283 = vcmp.gt.f32.partialorder %v280, 0.0
    %v284 = vmul.f32 %v278, 0.01
    %v285 = vmul.f32 %v280, 0.01
    %v286 = vsel %vm282, %v278, %v284
    %v287 = vsel %vm283, %v280, %v285
    %v288 = vpack.c.bf16 %v287, %v286
    %v289 = vld [vmem:[#allocation6] sm:$0xf]
    %v290 = vld [vmem:[#allocation6 + $0x4] sm:$0xf]
    %v291 = vld [vmem:[#allocation6 + $0x8] sm:$0xf]
    %v292 = vld [vmem:[#allocation6 + $0xc] sm:$0xf]
    %v293 = vld [vmem:[#allocation6 + $0x10] sm:$0xf]
    %v294 = vld [vmem:[#allocation6 + $0x14] sm:$0xf]
    %v295 = vld [vmem:[#allocation6 + $0x18] sm:$0xf]
    %v296 = vld [vmem:[#allocation6 + $0x1c] sm:$0xf]
    %v297 = vld [vmem:[#allocation6 + $0x20] sm:$0xf]
    %v298 = vld [vmem:[#allocation6 + $0x24] sm:$0xf]
    %v299 = vld [vmem:[#allocation6 + $0x28] sm:$0xf]
    %v300 = vld [vmem:[#allocation6 + $0x2c] sm:$0xf]
    %v301 = vld [vmem:[#allocation6 + $0x30] sm:$0xf]
    %v302 = vld [vmem:[#allocation6 + $0x34] sm:$0xf]
    %v303 = vld [vmem:[#allocation6 + $0x38] sm:$0xf]
    %v304 = vld [vmem:[#allocation6 + $0x3c] sm:$0xf]
    %v305 = vld [vmem:[%s9] sm:$0x1]
    %v307 = vperm.slane %v305, 0
    %v325 = vunpack.c.l.b16 %v289
    %v326 = vunpack.c.l.b16 %v290
    %v327 = vunpack.c.l.b16 %v291
    %v328 = vunpack.c.l.b16 %v292
    %v329 = vunpack.c.l.b16 %v293
    %v330 = vunpack.c.l.b16 %v294
    %v331 = vunpack.c.l.b16 %v295
    %v332 = vunpack.c.l.b16 %v296
    %v333 = vunpack.c.l.b16 %v297
    %v334 = vunpack.c.l.b16 %v298
    %v335 = vunpack.c.l.b16 %v299
    %v336 = vunpack.c.l.b16 %v300
    %v337 = vunpack.c.l.b16 %v301
    %v338 = vunpack.c.l.b16 %v302
    %v339 = vunpack.c.l.b16 %v303
    %v340 = vunpack.c.l.b16 %v304
    %v341 = vpack.c.b16 %v326, %v325
    %v342 = vpack.c.b16 %v328, %v327
    %v343 = vpack.c.b16 %v330, %v329
    %v344 = vpack.c.b16 %v332, %v331
    %v345 = vpack.c.b16 %v334, %v333
    %v346 = vpack.c.b16 %v336, %v335
    %v347 = vpack.c.b16 %v338, %v337
    %v348 = vpack.c.b16 %v340, %v339
    %357 = vmatpush.bf16.msra.mxu0 %v348
    %358 = vmatpush.bf16.msra.mxu0 %v347
    %359 = vmatpush.bf16.msra.mxu0 %v346
    %360 = vmatpush.bf16.msra.mxu0 %v345
    %361 = vmatpush.bf16.msra.mxu0 %v344
    %362 = vmatpush.bf16.msra.mxu0 %v343
    %363 = vmatpush.bf16.msra.mxu0 %v342
    %364 = vmatpush.bf16.msra.mxu0 %v341
    %365 = vmatmul.bf16.gmra.mxu0 %v288
    %v366 = vpop.f32.mrf.mxu0
    %v367 = vadd.f32 %v307, %v366
    %v368 = vpop.f32.mrf.mxu0
    %v369 = vadd.f32 %v307, %v368
    %370 = vdwg.mxu0
    %371 = vst [vmem:[%s10] sm:$0xff] %v367
    %372 = vst [vmem:[%s10 + $0x8] sm:$0xff] %v369
    // Predicated region
    $region54: #{generator_fnn_forward.1} parent=1 // pred_check
      _
    $region55: #{generator_fnn_forward.1} parent=1 // pred_check_branch
      %374 = sbr.rel (0) target = $region57
    $region56: #{generator_fnn_forward.1} parent=1 // pred_region
      _
    $region57: #{generator_fnn_forward.1} parent=1 // pred_fallthru
      _
    // Predicated region
    $region58: #{generator_fnn_forward.1} parent=1 // pred_check
      _
    $region59: #{generator_fnn_forward.1} parent=1 // pred_check_branch
      %376 = sbr.rel (0) target = $region61
    $region60: #{generator_fnn_forward.1} parent=1 // pred_region
      _
    $region61: #{generator_fnn_forward.1} parent=1 // pred_fallthru
      _
    %377 = vsyncpa [#allocation3], 1
    %378 = vsyncpa [#allocation5], 1

</llo_original>
